<compile_context>
chip_gen: v5e
topology: v5e:2x2
jax: 0.10.0
libtpu: 0.0.40
codegen_flags: <defaults>
</compile_context>

<pallas_src>
from functools import partial

import numpy as np
import jax
import jax.numpy as jnp
from jax import lax
from jax.experimental import pallas as pl
from jax.experimental.pallas import tpu as pltpu

_F32 = jnp.float32
_BF16 = jnp.bfloat16


# --------------------------- chip-aware defaults -------------------------------

def _tpu_defaults():
    """Return (usable_vmem_bytes, softmax_dtype) from the actual chip generation."""
    kind = ""
    try:
        kind = jax.devices()[0].device_kind.lower()
    except Exception:
        pass
    try:
        cap = int(pltpu.get_tpu_info().vmem_capacity_bytes)
    except Exception:
        cap = (64 << 20) if "7" in kind else (128 << 20)
    cap -= cap // 5                      # ~20% headroom for Mosaic scratch / staging
    has_bf16_vpu = ("v6" in kind) or ("v7" in kind) or ("7x" in kind)
    return cap, (_BF16 if has_bf16_vpu else _F32)


def _pick_tm(n):
    """Target-row tile: >=128 when possible (keep the MXU fed), bf16 sublane aligned."""
    for tm in (256, 128, 64, 32, 16):
        if n % tm == 0:
            return tm
    return n


# --------------------------- shared attention math -----------------------------
# Traced both inside the Pallas kernels (recip = EUP approx reciprocal) and in the
# plain-JAX reference (exact divide), so the two paths stay structurally identical.

def _gat_attention(S_tgt_bf, S_src_bf, ew_rows, a_dst, a_src, hm,
                   *, heads, use_mask, sm_dtype, recip):
    """Dense multi-head GAT attention for a tile of target rows.

    S_tgt_bf: (TM, heads*D) bf16 transformed features of the target tile.
    S_src_bf: (N,  heads*D) bf16 transformed features of ALL source nodes.
    ew_rows:  (TM, N) bf16 fused edge weights (0 = non-edge, self-loop = 1).
    Returns (TM, heads*D) f32 aggregated messages (heads "concatenated" by lane offset).
    """
    # Fused attention scores: one bf16 MXU call per side for ALL heads.
    e_dst = jnp.dot(S_tgt_bf, a_dst, preferred_element_type=_F32)          # (TM, heads)
    e_src = lax.dot_general(a_src, S_src_bf, (((1,), (1,)), ((), ())),
                            preferred_element_type=_F32)                   # (heads, N)
    zero = jnp.asarray(0.0, sm_dtype)
    neg_big = jnp.asarray(-1e30, sm_dtype)
    mask_bias = jnp.where(ew_rows > 0, zero, neg_big)                      # (TM, N)

    out = None
    # TODO(synk): fuse this head loop into one contraction-axis MXU call at large N.
    for h in range(heads):                                                 # unrolled (<=2)
        logits = (e_dst[:, h:h + 1].astype(sm_dtype)
                  + e_src[h:h + 1, :].astype(sm_dtype))                    # (TM, N)
        logits = jnp.maximum(logits, 0.2 * logits)                         # LeakyReLU(0.2)
        logits = logits + mask_bias                                        # mask non-edges
        m = jnp.max(logits, axis=-1, keepdims=True)
        p = jnp.exp(logits - m)                                            # masked -> 0
        # NOTE: an all-masked row gives p == 1 everywhere; the result is still zero
        # only because msg multiplies by ew_rows == 0 (load-bearing if N is padded).
        denom = jnp.maximum(jnp.sum(p, axis=-1, keepdims=True).astype(_F32),
                            jnp.float32(1e-20))
        inv = recip(denom).astype(_BF16)                                   # (TM, 1)
        msg = (p.astype(_BF16) * ew_rows) * inv                            # softmax * ew
        # Column-masked aggregation: head h's output lands at its lane offset,
        # so the head "concat" is just the sum over heads.
        Sm = S_src_bf * hm[h:h + 1, :] if use_mask else S_src_bf
        acc = jnp.dot(msg, Sm, preferred_element_type=_F32)                # (TM, heads*D)
        out = acc if out is None else out + acc
    return out


# ------------------------------- Pallas kernels --------------------------------

def _gat_tile_kernel(xt_ref, xf_ref, ew_ref, w_ref, ad_ref, as_ref, hm_ref, b_ref,
                     o_ref, *, heads, use_mask, apply_relu, sm_dtype):
    """One GAT layer for one tile of target rows (grid axis 0 = target tile)."""
    # Transformed features: full source set + the target tile (cheap vs the N^2 work).
    S_full = jnp.dot(xf_ref[...], w_ref[...],
                     preferred_element_type=_F32).astype(_BF16)            # (N, heads*D)
    S_tile = jnp.dot(xt_ref[...], w_ref[...],
                     preferred_element_type=_F32).astype(_BF16)            # (TM, heads*D)
    agg = _gat_attention(S_tile, S_full, ew_ref[...], ad_ref[...], as_ref[...],
                         hm_ref[...], heads=heads, use_mask=use_mask,
                         sm_dtype=sm_dtype,
                         recip=lambda t: pl.reciprocal(t, approx=True))
    out = agg + b_ref[...]
    if apply_relu:
        out = jnp.maximum(out, 0.0)
    o_ref[...] = out.astype(o_ref.dtype)


def _pool_decoder_kernel(pool_ref, h2_ref, w3_ref, b3_ref, w4_ref, b4_ref, o_ref):
    """global_mean_pool (as dense matmul) + Linear -> ReLU -> (Dropout=id) -> Linear."""
    pooled = jnp.dot(pool_ref[...], h2_ref[...], preferred_element_type=_F32)
    d1 = jnp.dot(pooled.astype(_BF16), w3_ref[...],
                 preferred_element_type=_F32) + b3_ref[...]
    d1 = jnp.maximum(d1, 0.0)
    o_ref[...] = jnp.dot(d1.astype(_BF16), w4_ref[...],
                         preferred_element_type=_F32) + b4_ref[...]


# ------------------------------- call wrappers ----------------------------------

def _gat_vmem_bytes(n, tm, fin, fout, heads, sm_bytes):
    """Conservative per-grid-step VMEM estimate for one GAT-layer call."""
    bf, f32 = 2, 4
    io = (tm * fin * bf + n * fin * bf + tm * n * bf              # x tile, x full, ew rows
          + fin * fout * bf + 3 * heads * fout * bf + fout * f32  # W, a_dst/a_src/hm, bias
          + tm * fout * bf)                                       # output tile
    live = (2 * n * fout * (f32 + bf)                             # S_full (+ masked copy)
            + heads * n * f32 + tm * heads * f32                  # e_src, e_dst
            + tm * n * (3 * sm_bytes + bf)                        # logits / p / mask, msg
            + 2 * tm * fout * f32)                                # acc / out
    return 2 * io + live                                          # pipelining double-buffers io


def _gat_layer_call(x, ewm, w, a_dst, a_src, hm, b, *, heads, use_mask, apply_relu,
                    sm_dtype, tm, vmem_cap):
    n, fin = x.shape
    fout = w.shape[1]
    grid = (n // tm,)
    sm_bytes = jnp.dtype(sm_dtype).itemsize
    need = _gat_vmem_bytes(n, tm, fin, fout, heads, sm_bytes)
    vmem_limit = int(min(max(need, 8 << 20), vmem_cap))
    flops = (4 * n * fin * fout                                   # feature transforms
             + 4 * n * fout * heads                               # attention scores
             + 2 * heads * n * n * fout                           # aggregation matmul
             + 10 * heads * n * n)                                # softmax chain VPU work
    cost = pl.CostEstimate(flops=int(flops),
                           transcendentals=int(heads * n * n),
                           bytes_accessed=int(n * n * 2 + 2 * n * (fin + fout) * 2
                                              + fin * fout * 2))
    kernel = partial(_gat_tile_kernel, heads=heads, use_mask=use_mask,
                     apply_relu=apply_relu, sm_dtype=sm_dtype)
    return pl.pallas_call(
        kernel,
        out_shape=jax.ShapeDtypeStruct((n, fout), _BF16),
        grid_spec=pltpu.PrefetchScalarGridSpec(
            num_scalar_prefetch=0,
            grid=grid,
            in_specs=[
                pl.BlockSpec((tm, fin), lambda i: (i, 0)),        # target-tile features
                pl.BlockSpec((n, fin), lambda i: (0, 0)),         # full source features
                pl.BlockSpec((tm, n), lambda i: (i, 0)),          # edge-weight rows (bf16)
                pl.BlockSpec(w.shape, lambda i: (0, 0)),
                pl.BlockSpec(a_dst.shape, lambda i: (0, 0)),
                pl.BlockSpec(a_src.shape, lambda i: (0, 0)),
                pl.BlockSpec(hm.shape, lambda i: (0, 0)),
                pl.BlockSpec(b.shape, lambda i: (0, 0)),
            ],
            out_specs=pl.BlockSpec((tm, fout), lambda i: (i, 0)),
        ),
        compiler_params=pltpu.CompilerParams(
            dimension_semantics=("parallel",),
            vmem_limit_bytes=vmem_limit),
        cost_estimate=cost,
    )(x, x, ewm, w, a_dst, a_src, hm, b)


def _pool_decoder_call(pool, h2, w3, b3, w4, b4, *, vmem_cap):
    gp, n = pool.shape
    d = h2.shape[1]
    cp = w4.shape[1]
    inputs = (pool, h2, w3, b3, w4, b4)
    cost = pl.CostEstimate(
        flops=int(2 * gp * (n * d + d * w3.shape[1] + d * cp)),
        transcendentals=0,
        bytes_accessed=int(pool.size * 2 + h2.size * 2 + w3.size * 2
                           + w4.size * 2 + gp * cp * 4))
    return pl.pallas_call(
        _pool_decoder_kernel,
        out_shape=jax.ShapeDtypeStruct((gp, cp), jnp.float32),
        in_specs=[pl.BlockSpec(memory_space=pltpu.MemorySpace.VMEM)] * len(inputs),
        out_specs=pl.BlockSpec(memory_space=pltpu.MemorySpace.VMEM),
        compiler_params=pltpu.CompilerParams(
            vmem_limit_bytes=int(min(8 << 20, vmem_cap))),
        cost_estimate=cost,
    )(*inputs)


def spatial_lri_gnn_forward(x_bf, ew_bf, pool_bf, kp, *, heads1, n_graphs, output_dim,
                            sm_dtype, vmem_cap):
    n = x_bf.shape[0]
    tm = _pick_tm(n)
    h1 = _gat_layer_call(x_bf, ew_bf, kp["w1"], kp["a1_dst"], kp["a1_src"],
                         kp["hm1"], kp["b1"], heads=heads1, use_mask=True,
                         apply_relu=True, sm_dtype=sm_dtype, tm=tm, vmem_cap=vmem_cap)
    h2 = _gat_layer_call(h1, ew_bf, kp["w2"], kp["a2_dst"], kp["a2_src"],
                         kp["hm2"], kp["b2"], heads=1, use_mask=False,
                         apply_relu=False, sm_dtype=sm_dtype, tm=tm, vmem_cap=vmem_cap)
    out_pad = _pool_decoder_call(pool_bf, h2, kp["w3"], kp["b3"], kp["w4"], kp["b4"],
                                 vmem_cap=vmem_cap)
    return out_pad[:n_graphs, :output_dim]


# --------------------------- plain-JAX reference ---------------------------------

def _forward_ref(x_bf, ew_bf, pool_bf, kp, *, heads1, sm_dtype):
    exact = lambda t: 1.0 / t

    def layer(x_in, w, ad, a_s, hm, b, heads, use_mask, relu):
        S = jnp.dot(x_in, w, preferred_element_type=_F32).astype(_BF16)
        agg = _gat_attention(S, S, ew_bf, ad, a_s, hm, heads=heads, use_mask=use_mask,
                             sm_dtype=sm_dtype, recip=exact)
        out = agg + b
        if relu:
            out = jnp.maximum(out, 0.0)
        return out.astype(_BF16)

    h1 = layer(x_bf, kp["w1"], kp["a1_dst"], kp["a1_src"], kp["hm1"], kp["b1"],
               heads1, True, True)
    h2 = layer(h1, kp["w2"], kp["a2_dst"], kp["a2_src"], kp["hm2"], kp["b2"],
               1, False, False)
    pooled = jnp.dot(pool_bf, h2, preferred_element_type=_F32)
    d1 = jnp.maximum(jnp.dot(pooled.astype(_BF16), kp["w3"],
                             preferred_element_type=_F32) + kp["b3"], 0.0)
    return jnp.dot(d1.astype(_BF16), kp["w4"], preferred_element_type=_F32) + kp["b4"]


# ----------------------------------- main ----------------------------------------

if __name__ == "__main__":
    # Model dims (SpatialLRIGNN(input_dim=6, lri_feat_dim=2, hidden_dim=32, output_dim=4))
    input_dim, lri_feat_dim, hidden, output_dim = 6, 2, 32, 4
    heads1 = 2
    feat = input_dim + lri_feat_dim                    # x already carries LRI features

    # Graph: 2 graphs x 8 nodes, bidirectional ring within each graph.
    n_per_graph, n_graphs = 8, 2
    N = n_per_graph * n_graphs
    src, dst = [], []
    for g in range(n_graphs):
        base = g * n_per_graph
        for i in range(n_per_graph):
            a, b = base + i, base + (i + 1) % n_per_graph
            src += [a, b]
            dst += [b, a]
    edge_index = np.stack([np.array(src), np.array(dst)])          # (2, E)
    E = edge_index.shape[1]
    batch = np.repeat(np.arange(n_graphs), n_per_graph)            # (N,)

    key = jax.random.PRNGKey(0)
    ks = jax.random.split(key, 16)
    x = jax.random.normal(ks[0], (N, feat), jnp.float32)
    edge_weight = jax.random.uniform(ks[1], (E,), jnp.float32, 0.5, 1.5)

    # ---- densify graph structure (host glue) ----
    # Single fused matrix: 0 = non-edge, edge -> its weight, self-loop -> 1.
    ew_np = np.asarray(edge_weight)
    assert np.all(ew_np > 0), "non-positive edge weights would be masked as non-edges"
    ewm = np.zeros((N, N), np.float32)
    for e in range(E):
        s, d = int(edge_index[0, e]), int(edge_index[1, e])
        ewm[d, s] = ew_np[e]                    # message s -> d
    np.fill_diagonal(ewm, 1.0)                  # GATConv default add_self_loops

    # Padded sizes: bf16 sublane tile (16), lane-dense decoder output (128).
    FP, GP, CP = 16, 16, 128
    pool_pad = np.zeros((GP, N), np.float32)    # mean-pool matrix; padded rows are zero
    for i, g in enumerate(batch):
        pool_pad[g, i] = 1.0 / n_per_graph

    # ---- deterministic synthetic parameters (natural layout) ----
    def init(k, shape, scale=0.1):
        return (jax.random.normal(k, shape, jnp.float32) * scale).astype(jnp.float32)

    w1 = init(ks[2], (feat, heads1 * hidden))
    a1_src = init(ks[3], (heads1, hidden))
    a1_dst = init(ks[4], (heads1, hidden))
    b1 = init(ks[5], (1, heads1 * hidden))
    w2 = init(ks[6], (heads1 * hidden, hidden))
    a2_src = init(ks[7], (1, hidden))
    a2_dst = init(ks[8], (1, hidden))
    b2 = init(ks[9], (1, hidden))
    w3 = init(ks[10], (hidden, hidden))
    b3 = init(ks[11], (1, hidden))
    w4 = init(ks[12], (hidden, output_dim))
    b4 = init(ks[13], (1, output_dim))

    # ---- host precompute: fused attention matrices, head column mask, padding, bf16 ----
    hd = heads1 * hidden
    a1d_np = np.zeros((hd, heads1), np.float32)       # block-diag dst vectors (columns)
    a1s_np = np.zeros((heads1, hd), np.float32)       # block-diag src vectors (rows)
    hm1_np = np.zeros((heads1, hd), np.float32)       # 0/1 per-head column mask
    a1s_h, a1d_h = np.asarray(a1_src), np.asarray(a1_dst)
    for h in range(heads1):
        a1d_np[h * hidden:(h + 1) * hidden, h] = a1d_h[h]
        a1s_np[h, h * hidden:(h + 1) * hidden] = a1s_h[h]
        hm1_np[h, h * hidden:(h + 1) * hidden] = 1.0

    x_pad = np.zeros((N, FP), np.float32); x_pad[:, :feat] = np.asarray(x)
    w1_pad = np.zeros((FP, hd), np.float32); w1_pad[:feat, :] = np.asarray(w1)
    w4_pad = np.zeros((hidden, CP), np.float32); w4_pad[:, :output_dim] = np.asarray(w4)
    b4_pad = np.zeros((1, CP), np.float32); b4_pad[:, :output_dim] = np.asarray(b4)

    kp = {
        "w1": jnp.asarray(w1_pad, _BF16),
        "a1_dst": jnp.asarray(a1d_np, _BF16),
        "a1_src": jnp.asarray(a1s_np, _BF16),
        "hm1": jnp.asarray(hm1_np, _BF16),
        "b1": b1,
        "w2": w2.astype(_BF16),
        "a2_dst": a2_dst.T.astype(_BF16),       # (hidden, 1)
        "a2_src": a2_src.astype(_BF16),         # (1, hidden)
        "hm2": jnp.ones((1, hidden), _BF16),    # unused (use_mask=False)
        "b2": b2,
        "w3": w3.astype(_BF16),
        "b3": b3,
        "w4": jnp.asarray(w4_pad, _BF16),
        "b4": jnp.asarray(b4_pad),
    }
    x_in = jnp.asarray(x_pad, _BF16)
    ew_in = jnp.asarray(ewm, _BF16)             # bf16 fused edge-weight matrix
    pool_in = jnp.asarray(pool_pad, _BF16)

    vmem_cap, sm_dtype = _tpu_defaults()

    # ---- Pallas kernels ----
    out = spatial_lri_gnn_forward(x_in, ew_in, pool_in, kp,
                                  heads1=heads1, n_graphs=n_graphs,
                                  output_dim=output_dim, sm_dtype=sm_dtype,
                                  vmem_cap=vmem_cap)
    out = jax.block_until_ready(out)

    # ---- plain-JAX reference (same precision policy; exact divide instead of EUP) ----
    ref_pad = _forward_ref(x_in, ew_in, pool_in, kp, heads1=heads1, sm_dtype=sm_dtype)
    ref = np.asarray(ref_pad)[:n_graphs, :output_dim]

    assert out.shape == (n_graphs, output_dim)
    np.testing.assert_allclose(np.asarray(out), ref, rtol=2e-2, atol=3e-3)

    print("KERNEL_OK")
</pallas_src>

<mosaic_0001>
module attributes {stable_mosaic.version = 11 : i64} {
  func.func @_gat_tile_kernel(%arg0: i32, %arg1: memref<16x16xbf16, #tpu.memory_space<vmem>>, %arg2: memref<16x16xbf16, #tpu.memory_space<vmem>>, %arg3: memref<16x16xbf16, #tpu.memory_space<vmem>>, %arg4: memref<16x64xbf16, #tpu.memory_space<vmem>>, %arg5: memref<64x2xbf16, #tpu.memory_space<vmem>>, %arg6: memref<2x64xbf16, #tpu.memory_space<vmem>>, %arg7: memref<2x64xbf16, #tpu.memory_space<vmem>>, %arg8: memref<1x64xf32, #tpu.memory_space<vmem>>, %arg9: memref<16x64xbf16, #tpu.memory_space<vmem>>) attributes {dimension_semantics = [#tpu.dimension_semantics<parallel>], iteration_bounds = array<i64: 1>, scalar_prefetch = 0 : i64, scratch_operands = 0 : i64, tpu.core_type = #tpu.core_type<tc>, window_params = [{transform_indices = @transform_0, window_bounds = array<i64: 16, 16>}, {pipeline_mode = #tpu.pipeline_mode<synchronous>, transform_indices = @transform_1, window_bounds = array<i64: 16, 16>}, {transform_indices = @transform_2, window_bounds = array<i64: 16, 16>}, {pipeline_mode = #tpu.pipeline_mode<synchronous>, transform_indices = @transform_3, window_bounds = array<i64: 16, 64>}, {pipeline_mode = #tpu.pipeline_mode<synchronous>, transform_indices = @transform_4, window_bounds = array<i64: 64, 2>}, {pipeline_mode = #tpu.pipeline_mode<synchronous>, transform_indices = @transform_5, window_bounds = array<i64: 2, 64>}, {pipeline_mode = #tpu.pipeline_mode<synchronous>, transform_indices = @transform_6, window_bounds = array<i64: 2, 64>}, {pipeline_mode = #tpu.pipeline_mode<synchronous>, transform_indices = @transform_7, window_bounds = array<i64: 1, 64>}, {transform_indices = @transform_8, window_bounds = array<i64: 16, 64>}]} {
    %c0 = arith.constant 0 : index
    %c0_0 = arith.constant 0 : index
    %0 = vector.load %arg2[%c0, %c0_0] : memref<16x16xbf16, #tpu.memory_space<vmem>>, vector<16x16xbf16>
    %c0_1 = arith.constant 0 : index
    %c0_2 = arith.constant 0 : index
    %1 = vector.load %arg4[%c0_1, %c0_2] : memref<16x64xbf16, #tpu.memory_space<vmem>>, vector<16x64xbf16>
    %cst = arith.constant dense<0.000000e+00> : vector<16x64xf32>
    %2 = tpu.matmul %0, %1, %cst {dimension_numbers = #tpu.dot_dimension_numbers<[1], [0], [0], [1], [0, 0, 1, 1], [], []>} : vector<16x16xbf16>, vector<16x64xbf16>, vector<16x64xf32> -> vector<16x64xf32>
    %3 = arith.truncf %2 : vector<16x64xf32> to vector<16x64xbf16>
    %c0_3 = arith.constant 0 : index
    %c0_4 = arith.constant 0 : index
    %4 = vector.load %arg1[%c0_3, %c0_4] : memref<16x16xbf16, #tpu.memory_space<vmem>>, vector<16x16xbf16>
    %c0_5 = arith.constant 0 : index
    %c0_6 = arith.constant 0 : index
    %5 = vector.load %arg4[%c0_5, %c0_6] : memref<16x64xbf16, #tpu.memory_space<vmem>>, vector<16x64xbf16>
    %cst_7 = arith.constant dense<0.000000e+00> : vector<16x64xf32>
    %6 = tpu.matmul %4, %5, %cst_7 {dimension_numbers = #tpu.dot_dimension_numbers<[1], [0], [0], [1], [0, 0, 1, 1], [], []>} : vector<16x16xbf16>, vector<16x64xbf16>, vector<16x64xf32> -> vector<16x64xf32>
    %7 = arith.truncf %6 : vector<16x64xf32> to vector<16x64xbf16>
    %c0_8 = arith.constant 0 : index
    %c0_9 = arith.constant 0 : index
    %8 = vector.load %arg3[%c0_8, %c0_9] : memref<16x16xbf16, #tpu.memory_space<vmem>>, vector<16x16xbf16>
    %c0_10 = arith.constant 0 : index
    %c0_11 = arith.constant 0 : index
    %9 = vector.load %arg5[%c0_10, %c0_11] : memref<64x2xbf16, #tpu.memory_space<vmem>>, vector<64x2xbf16>
    %c0_12 = arith.constant 0 : index
    %c0_13 = arith.constant 0 : index
    %10 = vector.load %arg6[%c0_12, %c0_13] : memref<2x64xbf16, #tpu.memory_space<vmem>>, vector<2x64xbf16>
    %c0_14 = arith.constant 0 : index
    %c0_15 = arith.constant 0 : index
    %11 = vector.load %arg7[%c0_14, %c0_15] : memref<2x64xbf16, #tpu.memory_space<vmem>>, vector<2x64xbf16>
    %cst_16 = arith.constant dense<0.000000e+00> : vector<16x2xf32>
    %12 = tpu.matmul %7, %9, %cst_16 {dimension_numbers = #tpu.dot_dimension_numbers<[1], [0], [0], [1], [0, 0, 1, 1], [], []>} : vector<16x64xbf16>, vector<64x2xbf16>, vector<16x2xf32> -> vector<16x2xf32>
    %cst_17 = arith.constant dense<0.000000e+00> : vector<2x16xf32>
    %13 = tpu.matmul %10, %3, %cst_17 {dimension_numbers = #tpu.dot_dimension_numbers<[1], [1], [0], [0], [0, 0, 1, 0], [], []>} : vector<2x64xbf16>, vector<16x64xbf16>, vector<2x16xf32> -> vector<2x16xf32>
    %cst_18 = arith.constant 0.000000e+00 : bf16
    %14 = vector.broadcast %cst_18 : bf16 to vector<16x16xbf16>
    %15 = arith.cmpf ogt, %8, %14 : vector<16x16xbf16>
    %cst_19 = arith.constant 0.000000e+00 : f32
    %cst_20 = arith.constant -1.000000e+30 : f32
    %16 = vector.broadcast %cst_19 : f32 to vector<16x16xf32>
    %17 = vector.broadcast %cst_20 : f32 to vector<16x16xf32>
    %18 = arith.select %15, %16, %17 : vector<16x16xi1>, vector<16x16xf32>
    %19 = vector.extract_strided_slice %12 {offsets = [0, 0], sizes = [16, 1], strides = [1, 1]} : vector<16x2xf32> to vector<16x1xf32>
    %20 = vector.extract_strided_slice %13 {offsets = [0, 0], sizes = [1, 16], strides = [1, 1]} : vector<2x16xf32> to vector<1x16xf32>
    %21 = vector.broadcast %19 : vector<16x1xf32> to vector<16x16xf32>
    %22 = vector.broadcast %20 : vector<1x16xf32> to vector<16x16xf32>
    %23 = arith.addf %21, %22 : vector<16x16xf32>
    %cst_21 = arith.constant 2.000000e-01 : f32
    %24 = vector.broadcast %cst_21 : f32 to vector<16x16xf32>
    %25 = arith.mulf %24, %23 : vector<16x16xf32>
    %26 = arith.maximumf %23, %25 : vector<16x16xf32>
    %27 = arith.addf %26, %18 : vector<16x16xf32>
    %cst_22 = arith.constant dense<0xFF800000> : vector<16xf32>
    %28 = vector.multi_reduction <maximumf>, %27, %cst_22 [1] : vector<16x16xf32> to vector<16xf32>
    %29 = vector.shape_cast %28 : vector<16xf32> to vector<16x1xf32>
    %30 = vector.broadcast %29 : vector<16x1xf32> to vector<16x16xf32>
    %31 = arith.subf %27, %30 : vector<16x16xf32>
    %32 = math.exp %31 : vector<16x16xf32>
    %cst_23 = arith.constant dense<0.000000e+00> : vector<16xf32>
    %33 = vector.multi_reduction <add>, %32, %cst_23 [1] : vector<16x16xf32> to vector<16xf32>
    %34 = vector.shape_cast %33 : vector<16xf32> to vector<16x1xf32>
    %cst_24 = arith.constant 9.99999968E-21 : f32
    %35 = vector.broadcast %cst_24 : f32 to vector<16x1xf32>
    %36 = arith.maximumf %34, %35 : vector<16x1xf32>
    %37 = tpu.reciprocal %36 {approx = true} : vector<16x1xf32> -> vector<16x1xf32>
    %38 = arith.truncf %37 : vector<16x1xf32> to vector<16x1xbf16>
    %39 = arith.truncf %32 : vector<16x16xf32> to vector<16x16xbf16>
    %40 = arith.mulf %39, %8 : vector<16x16xbf16>
    %41 = vector.broadcast %38 : vector<16x1xbf16> to vector<16x16xbf16>
    %42 = arith.mulf %40, %41 : vector<16x16xbf16>
    %43 = vector.extract_strided_slice %11 {offsets = [0, 0], sizes = [1, 64], strides = [1, 1]} : vector<2x64xbf16> to vector<1x64xbf16>
    %44 = vector.broadcast %43 : vector<1x64xbf16> to vector<16x64xbf16>
    %45 = arith.mulf %3, %44 : vector<16x64xbf16>
    %cst_25 = arith.constant dense<0.000000e+00> : vector<16x64xf32>
    %46 = tpu.matmul %42, %45, %cst_25 {dimension_numbers = #tpu.dot_dimension_numbers<[1], [0], [0], [1], [0, 0, 1, 1], [], []>} : vector<16x16xbf16>, vector<16x64xbf16>, vector<16x64xf32> -> vector<16x64xf32>
    %47 = vector.extract_strided_slice %12 {offsets = [0, 1], sizes = [16, 1], strides = [1, 1]} : vector<16x2xf32> to vector<16x1xf32>
    %48 = vector.extract_strided_slice %13 {offsets = [1, 0], sizes = [1, 16], strides = [1, 1]} : vector<2x16xf32> to vector<1x16xf32>
    %49 = vector.broadcast %47 : vector<16x1xf32> to vector<16x16xf32>
    %50 = vector.broadcast %48 : vector<1x16xf32> to vector<16x16xf32>
    %51 = arith.addf %49, %50 : vector<16x16xf32>
    %cst_26 = arith.constant 2.000000e-01 : f32
    %52 = vector.broadcast %cst_26 : f32 to vector<16x16xf32>
    %53 = arith.mulf %52, %51 : vector<16x16xf32>
    %54 = arith.maximumf %51, %53 : vector<16x16xf32>
    %55 = arith.addf %54, %18 : vector<16x16xf32>
    %cst_27 = arith.constant dense<0xFF800000> : vector<16xf32>
    %56 = vector.multi_reduction <maximumf>, %55, %cst_27 [1] : vector<16x16xf32> to vector<16xf32>
    %57 = vector.shape_cast %56 : vector<16xf32> to vector<16x1xf32>
    %58 = vector.broadcast %57 : vector<16x1xf32> to vector<16x16xf32>
    %59 = arith.subf %55, %58 : vector<16x16xf32>
    %60 = math.exp %59 : vector<16x16xf32>
    %cst_28 = arith.constant dense<0.000000e+00> : vector<16xf32>
    %61 = vector.multi_reduction <add>, %60, %cst_28 [1] : vector<16x16xf32> to vector<16xf32>
    %62 = vector.shape_cast %61 : vector<16xf32> to vector<16x1xf32>
    %cst_29 = arith.constant 9.99999968E-21 : f32
    %63 = vector.broadcast %cst_29 : f32 to vector<16x1xf32>
    %64 = arith.maximumf %62, %63 : vector<16x1xf32>
    %65 = tpu.reciprocal %64 {approx = true} : vector<16x1xf32> -> vector<16x1xf32>
    %66 = arith.truncf %65 : vector<16x1xf32> to vector<16x1xbf16>
    %67 = arith.truncf %60 : vector<16x16xf32> to vector<16x16xbf16>
    %68 = arith.mulf %67, %8 : vector<16x16xbf16>
    %69 = vector.broadcast %66 : vector<16x1xbf16> to vector<16x16xbf16>
    %70 = arith.mulf %68, %69 : vector<16x16xbf16>
    %71 = vector.extract_strided_slice %11 {offsets = [1, 0], sizes = [1, 64], strides = [1, 1]} : vector<2x64xbf16> to vector<1x64xbf16>
    %72 = vector.broadcast %71 : vector<1x64xbf16> to vector<16x64xbf16>
    %73 = arith.mulf %3, %72 : vector<16x64xbf16>
    %cst_30 = arith.constant dense<0.000000e+00> : vector<16x64xf32>
    %74 = tpu.matmul %70, %73, %cst_30 {dimension_numbers = #tpu.dot_dimension_numbers<[1], [0], [0], [1], [0, 0, 1, 1], [], []>} : vector<16x16xbf16>, vector<16x64xbf16>, vector<16x64xf32> -> vector<16x64xf32>
    %75 = arith.addf %46, %74 : vector<16x64xf32>
    %c0_31 = arith.constant 0 : index
    %c0_32 = arith.constant 0 : index
    %76 = vector.load %arg8[%c0_31, %c0_32] : memref<1x64xf32, #tpu.memory_space<vmem>>, vector<1x64xf32>
    %77 = vector.broadcast %76 : vector<1x64xf32> to vector<16x64xf32>
    %78 = arith.addf %75, %77 : vector<16x64xf32>
    %cst_33 = arith.constant 0.000000e+00 : f32
    %79 = vector.broadcast %cst_33 : f32 to vector<16x64xf32>
    %80 = arith.maximumf %78, %79 : vector<16x64xf32>
    %81 = arith.truncf %80 : vector<16x64xf32> to vector<16x64xbf16>
    %c0_34 = arith.constant 0 : index
    %c0_35 = arith.constant 0 : index
    %82 = vector.load %arg9[%c0_34, %c0_35] : memref<16x64xbf16, #tpu.memory_space<vmem>>, vector<16x64xbf16>
    tpu.vector_store %arg9[%c0_34, %c0_35], %81 {strides = array<i32>} : memref<16x64xbf16, #tpu.memory_space<vmem>>, vector<16x64xbf16>,
    return
  }
  func.func @transform_0(%arg0: i32) -> (i32, i32) {
    %c0_i32 = arith.constant 0 : i32
    %c0_i32_0 = arith.constant 0 : i32
    return %arg0, %c0_i32 : i32, i32
  }
  func.func @transform_1(%arg0: i32) -> (i32, i32) {
    %c0_i32 = arith.constant 0 : i32
    %c0_i32_0 = arith.constant 0 : i32
    %c0_i32_1 = arith.constant 0 : i32
    return %c0_i32, %c0_i32_0 : i32, i32
  }
  func.func @transform_2(%arg0: i32) -> (i32, i32) {
    %c0_i32 = arith.constant 0 : i32
    %c0_i32_0 = arith.constant 0 : i32
    return %arg0, %c0_i32 : i32, i32
  }
  func.func @transform_3(%arg0: i32) -> (i32, i32) {
    %c0_i32 = arith.constant 0 : i32
    %c0_i32_0 = arith.constant 0 : i32
    %c0_i32_1 = arith.constant 0 : i32
    return %c0_i32, %c0_i32_0 : i32, i32
  }
  func.func @transform_4(%arg0: i32) -> (i32, i32) {
    %c0_i32 = arith.constant 0 : i32
    %c0_i32_0 = arith.constant 0 : i32
    %c0_i32_1 = arith.constant 0 : i32
    return %c0_i32, %c0_i32_0 : i32, i32
  }
  func.func @transform_5(%arg0: i32) -> (i32, i32) {
    %c0_i32 = arith.constant 0 : i32
    %c0_i32_0 = arith.constant 0 : i32
    %c0_i32_1 = arith.constant 0 : i32
    return %c0_i32, %c0_i32_0 : i32, i32
  }
  func.func @transform_6(%arg0: i32) -> (i32, i32) {
    %c0_i32 = arith.constant 0 : i32
    %c0_i32_0 = arith.constant 0 : i32
    %c0_i32_1 = arith.constant 0 : i32
    return %c0_i32, %c0_i32_0 : i32, i32
  }
  func.func @transform_7(%arg0: i32) -> (i32, i32) {
    %c0_i32 = arith.constant 0 : i32
    %c0_i32_0 = arith.constant 0 : i32
    %c0_i32_1 = arith.constant 0 : i32
    return %c0_i32, %c0_i32_0 : i32, i32
  }
  func.func @transform_8(%arg0: i32) -> (i32, i32) {
    %c0_i32 = arith.constant 0 : i32
    %c0_i32_0 = arith.constant 0 : i32
    return %arg0, %c0_i32 : i32, i32
  }
}

</mosaic_0001>

<llo_original>
// kernel: tpu_custom_call.1
$region0: #{tpu_custom_call.1}
  #allocation0 [shape = 'u32[]', space=smem, size = 0x4, offset = 0x4, fixed_abs, tag = 'smem constant byte address 0x4 - core index']
  #allocation1 [shape = 'u32[72,128]{1,0:T(1,128)}', space=vmem, size = 0x9000, scoped, tag = 'internal scratch']
  %s0 = inlined_call_operand.vmem [shape: bf16[16,16], index: 0, kind: input, shape index: {}]
  %s1 = inlined_call_operand.vmem [shape: bf16[16,16], index: 1, kind: input, shape index: {}]
  %s2 = inlined_call_operand.vmem [shape: bf16[16,16], index: 2, kind: input, shape index: {}]
  %s3 = inlined_call_operand.vmem [shape: bf16[16,64], index: 3, kind: input, shape index: {}]
  %s4 = inlined_call_operand.vmem [shape: bf16[64,2], index: 4, kind: input, shape index: {}]
  %s5 = inlined_call_operand.vmem [shape: bf16[2,64], index: 5, kind: input, shape index: {}]
  %s6 = inlined_call_operand.vmem [shape: bf16[2,64], index: 6, kind: input, shape index: {}]
  %s7 = inlined_call_operand.vmem [shape: f32[1,64], index: 7, kind: input, shape index: {}]
  %s8 = inlined_call_operand.hbm [shape: bf16[16,64], index: 8, kind: output, shape index: {}]
  %s9 = sld [smem:[#allocation0]]
  $region42: #{tpu_custom_call.1} parent=0
    _
  %s11 = ssub.s32 1, %s9
  %s12 = scalar_select 0, %s11, %s9
  $region1: #{tpu_custom_call.1} parent=0
    #allocation2 [shape = 'u8[4096]{0}', space=vmem, size = 0x1000, scoped, tag = 'output window, operand 0, single buffered']
    #allocation3 [shape = 's32[1]{0}', space=sflag, size = 0x4, scoped, tag = 'scoped memory for tpu_custom_call.1']
    %13 = vsyncpa [#allocation3], 0
    // Predicated region
    $region2: #{tpu_custom_call.1} parent=1 // pred_check
      _
    $region3: #{tpu_custom_call.1} parent=1 // pred_check_branch
      %15 = sbr.rel (0) target = $region5
    $region4: #{tpu_custom_call.1} parent=1 // pred_region
      _
    $region5: #{tpu_custom_call.1} parent=1 // pred_fallthru
      _
    // Predicated region
    $region6: #{tpu_custom_call.1} parent=1 // pred_check
      _
    $region7: #{tpu_custom_call.1} parent=1 // pred_check_branch
      %17 = sbr.rel (0) target = $region9
    $region8: #{tpu_custom_call.1} parent=1 // pred_region
      _
    $region9: #{tpu_custom_call.1} parent=1 // pred_fallthru
      _
    // Predicated region
    $region10: #{tpu_custom_call.1} parent=1 // pred_check
      _
    $region11: #{tpu_custom_call.1} parent=1 // pred_check_branch
      %19 = sbr.rel (0) target = $region13
    $region12: #{tpu_custom_call.1} parent=1 // pred_region
      _
    $region13: #{tpu_custom_call.1} parent=1 // pred_fallthru
      _
    // Predicated region
    $region14: #{tpu_custom_call.1} parent=1 // pred_check
      _
    $region15: #{tpu_custom_call.1} parent=1 // pred_check_branch
      %21 = sbr.rel (0) target = $region17
    $region16: #{tpu_custom_call.1} parent=1 // pred_region
      _
    $region17: #{tpu_custom_call.1} parent=1 // pred_fallthru
      _
    // Predicated region
    $region18: #{tpu_custom_call.1} parent=1 // pred_check
      _
    $region19: #{tpu_custom_call.1} parent=1 // pred_check_branch
      %23 = sbr.rel (0) target = $region21
    $region20: #{tpu_custom_call.1} parent=1 // pred_region
      _
    $region21: #{tpu_custom_call.1} parent=1 // pred_fallthru
      _
    // Predicated region
    $region22: #{tpu_custom_call.1} parent=1 // pred_check
      _
    $region23: #{tpu_custom_call.1} parent=1 // pred_check_branch
      %25 = sbr.rel (0) target = $region25
    $region24: #{tpu_custom_call.1} parent=1 // pred_region
      _
    $region25: #{tpu_custom_call.1} parent=1 // pred_fallthru
      _
    // Predicated region
    $region26: #{tpu_custom_call.1} parent=1 // pred_check
      _
    $region27: #{tpu_custom_call.1} parent=1 // pred_check_branch
      %27 = sbr.rel (0) target = $region29
    $region28: #{tpu_custom_call.1} parent=1 // pred_region
      _
    $region29: #{tpu_custom_call.1} parent=1 // pred_fallthru
      _
    // Predicated region
    $region30: #{tpu_custom_call.1} parent=1 // pred_check
      _
    $region31: #{tpu_custom_call.1} parent=1 // pred_check_branch
      %29 = sbr.rel (0) target = $region33
    $region32: #{tpu_custom_call.1} parent=1 // pred_region
      _
    $region33: #{tpu_custom_call.1} parent=1 // pred_fallthru
      _
    %v31 = vld [vmem:[%s1] sm:$0xf]
    %v32 = vld [vmem:[%s1 + $0x4] sm:$0xf]
    %v33 = vld [vmem:[%s3] sm:$0xf]
    %v34 = vld [vmem:[%s3 + $0x4] sm:$0xf]
    %v37 = vunpack.c.l.b16 %v31
    %v38 = vunpack.c.l.b16 %v32
    %v39 = vpack.c.b16 %v38, %v37
    %v42 = vunpack.c.l.b16 %v33
    %v43 = vunpack.c.l.b16 %v34
    %v44 = vpack.c.b16 %v43, %v42
    %vm46 = vcmask 130048
    %v48 = vsel %vm46, %v39, 0
    %50 = vmatpush.bf16.msra.mxu0 0
    %51 = vmatpush.bf16.msra.mxu0 0
    %52 = vmatpush.bf16.msra.mxu0 0
    %53 = vmatpush.bf16.msra.mxu0 0
    %54 = vmatpush.bf16.msra.mxu0 0
    %55 = vmatpush.bf16.msra.mxu0 0
    %56 = vmatpush.bf16.msra.mxu0 0
    %57 = vmatpush.bf16.msra.mxu0 %v44
    %58 = vmatmul.bf16.gmra.mxu0 %v48
    %v59 = vpop.f32.mrf.mxu0
    %v60 = vadd.f32 0.0, %v59
    %v61 = vpop.f32.mrf.mxu0
    %v62 = vadd.f32 0.0, %v61
    %63 = vdwg.mxu0
    %v64 = vpack.c.bf16 %v60, %v60
    %v65 = vpack.c.bf16 %v62, %v62
    %v66 = vld [vmem:[%s0] sm:$0xf]
    %v67 = vld [vmem:[%s0 + $0x4] sm:$0xf]
    %v70 = vunpack.c.l.b16 %v66
    %v71 = vunpack.c.l.b16 %v67
    %v72 = vpack.c.b16 %v71, %v70
    %v74 = vsel %vm46, %v72, 0
    %76 = vmatpush.bf16.msra.mxu0 0
    %77 = vmatpush.bf16.msra.mxu0 0
    %78 = vmatpush.bf16.msra.mxu0 0
    %79 = vmatpush.bf16.msra.mxu0 0
    %80 = vmatpush.bf16.msra.mxu0 0
    %81 = vmatpush.bf16.msra.mxu0 0
    %82 = vmatpush.bf16.msra.mxu0 0
    %83 = vmatpush.bf16.msra.mxu0 %v44
    %84 = vmatmul.bf16.gmra.mxu0 %v74
    %v85 = vpop.f32.mrf.mxu0
    %v86 = vadd.f32 0.0, %v85
    %v87 = vpop.f32.mrf.mxu0
    %v88 = vadd.f32 0.0, %v87
    %89 = vdwg.mxu0
    %v90 = vpack.c.bf16 %v88, %v86
    %v91 = vld [vmem:[%s2] sm:$0xf]
    %v92 = vld [vmem:[%s2 + $0x4] sm:$0xf]
    %v93 = vld [vmem:[%s4] sm:$0xf]
    %v94 = vld [vmem:[%s4 + $0x4] sm:$0xf]
    %v95 = vld [vmem:[%s4 + $0x8] sm:$0xf]
    %v96 = vld [vmem:[%s4 + $0xc] sm:$0xf]
    %v97 = vld [vmem:[%s4 + $0x10] sm:$0xf]
    %v98 = vld [vmem:[%s4 + $0x14] sm:$0xf]
    %v99 = vld [vmem:[%s4 + $0x18] sm:$0xf]
    %v100 = vld [vmem:[%s4 + $0x1c] sm:$0xf]
    %v101 = vld [vmem:[%s5] sm:$0x1]
    %v102 = vld [vmem:[%s6] sm:$0x1]
    %v111 = vunpack.c.l.b16 %v93
    %v112 = vunpack.c.l.b16 %v94
    %v113 = vunpack.c.l.b16 %v95
    %v114 = vunpack.c.l.b16 %v96
    %v115 = vunpack.c.l.b16 %v97
    %v116 = vunpack.c.l.b16 %v98
    %v117 = vunpack.c.l.b16 %v99
    %v118 = vunpack.c.l.b16 %v100
    %v119 = vpack.c.b16 %v112, %v111
    %v120 = vpack.c.b16 %v114, %v113
    %v121 = vpack.c.b16 %v116, %v115
    %v122 = vpack.c.b16 %v118, %v117
    %vm127 = vcmask 523264
    %v129 = vsel %vm127, %v90, 0
    %131 = vmatpush.bf16.msra.mxu0 0
    %132 = vmatpush.bf16.msra.mxu0 0
    %133 = vmatpush.bf16.msra.mxu0 0
    %134 = vmatpush.bf16.msra.mxu0 0
    %135 = vmatpush.bf16.msra.mxu0 %v122
    %136 = vmatpush.bf16.msra.mxu0 %v121
    %137 = vmatpush.bf16.msra.mxu0 %v120
    %138 = vmatpush.bf16.msra.mxu0 %v119
    %139 = vmatmul.bf16.gmra.mxu0 %v129
    %v140 = vpop.f32.mrf.mxu0
    %v141 = vadd.f32 0.0, %v140
    %v142 = vpop.f32.mrf.mxu0
    %v143 = vadd.f32 0.0, %v142
    %144 = vdwg.mxu0
    %v147 = vunpack.c.l.b16 %v64
    %v148 = vunpack.c.l.b16 %v65
    %v149 = vpack.c.b16 %v148, %v147
    %v151 = vsel %vm127, %v101, 0
    %v154 = vsel %vm127, %v149, 0
    %156 = vmatpush.bf16.xpose.msra.mxu0 0
    %157 = vmatpush.bf16.xpose.msra.mxu0 0
    %158 = vmatpush.bf16.xpose.msra.mxu0 0
    %159 = vmatpush.bf16.xpose.msra.mxu0 0
    %160 = vmatpush.bf16.xpose.msra.mxu0 0
    %161 = vmatpush.bf16.xpose.msra.mxu0 0
    %162 = vmatpush.bf16.xpose.msra.mxu0 0
    %163 = vmatpush.bf16.xpose.msra.mxu0 %v154
    %164 = vmatmul.bf16.gmra.mxu0 %v151
    %v165 = vpop.f32.mrf.mxu0
    %v166 = vadd.f32 0.0, %v165
    %v167 = vpop.f32.mrf.mxu0
    %168 = vdwg.mxu0
    %v169 = vunpack.c.l.bf16 %v91
    %v170 = vunpack.c.l.bf16 %v92
    %vm171 = vcmp.gt.f32.partialorder %v169, 0.0
    %vm172 = vcmp.gt.f32.partialorder %v170, 0.0
    %v173 = vsel %vm171, 0.0, -1e+30
    %v174 = vsel %vm172, 0.0, -1e+30
    %176 = vset.pattern.permute.xlu0 0
    %177 = vperm.xlu0 %176, %v141
    %v178 = vpop.permute.xlu0 %177
    %181 = vset.pattern.permute.xlu0 0
    %182 = vperm.xlu0 %181, %v143
    %v183 = vpop.permute.xlu0 %182
    %v185 = vperm.slane %v166, 0
    %v186 = vadd.f32 %v178, %v185
    %v187 = vadd.f32 %v183, %v185
    %v188 = vmul.f32 %v186, 0.2
    %v189 = vmul.f32 %v187, 0.2
    %v190 = vmax.f32 %v186, %v188
    %v191 = vmax.f32 %v187, %v189
    %v192 = vadd.f32 %v190, %v173
    %v193 = vadd.f32 %v191, %v174
    %v194 = vsel %vm46, %v192, -inf
    %195 = vmax.xlane.f32.xlu0 %v194
    %v196 = vpop.xlane.xlu0 %195
    %v197 = vsel %vm46, %v193, -inf
    %198 = vmax.xlane.f32.xlu0 %v197
    %v199 = vpop.xlane.xlu0 %198
    %v200 = vsub.f32 %v192, %v196
    %v201 = vsub.f32 %v193, %v199
    %v202 = vmul.f32 %v200, 1.442695
    %v203 = vpow.pop %v202
    %v204 = vmul.f32 %v201, 1.442695
    %v205 = vpow.pop %v204
    %v206 = vsel %vm46, %v203, 0.0
    %207 = vadd.xlane.f32.xlu0 %v206
    %v208 = vpop.xlane.xlu0 %207
    %v209 = vsel %vm46, %v205, 0.0
    %210 = vadd.xlane.f32.xlu0 %v209
    %v211 = vpop.xlane.xlu0 %210
    %v212 = vmax.f32 %v208, 1e-20
    %v213 = vmax.f32 %v211, 1e-20
    %v214 = vrcp.pop %v212
    %v215 = vrcp.pop %v213
    %v216 = vpack.c.bf16 %v214, %v214
    %v217 = vpack.c.bf16 %v215, %v215
    %v218 = vpack.c.bf16 %v203, %v203
    %v219 = vpack.c.bf16 %v205, %v205
    %v220 = vunpack.c.l.bf16 %v218
    %v221 = vunpack.c.l.bf16 %v219
    %v222 = vmul.f32 %v220, %v169
    %v223 = vmul.f32 %v221, %v170
    %v224 = vpack.c.bf16 %v222, %v222
    %v225 = vpack.c.bf16 %v223, %v223
    %v226 = vunpack.c.l.bf16 %v224
    %v227 = vunpack.c.l.bf16 %v225
    %v228 = vunpack.c.l.bf16 %v216
    %v229 = vunpack.c.l.bf16 %v217
    %v230 = vmul.f32 %v226, %v228
    %v231 = vmul.f32 %v227, %v229
    %v232 = vpack.c.bf16 %v231, %v230
    %v234 = vpack.i.b16 %v102, %v102
    %v236 = vperm.slane %v234, 0
    %v237 = vunpack.c.l.bf16 %v64
    %v238 = vunpack.c.l.bf16 %v65
    %v239 = vunpack.c.l.bf16 %v236
    %v240 = vmul.f32 %v237, %v239
    %v241 = vmul.f32 %v238, %v239
    %v242 = vpack.c.bf16 %v241, %v240
    %243 = vset.pattern.permute.xlu0 1
    %244 = vperm.xlu0 %243, %v141
    %v245 = vpop.permute.xlu0 %244
    %247 = vset.pattern.permute.xlu0 1
    %248 = vperm.xlu0 %247, %v143
    %v249 = vpop.permute.xlu0 %248
    %v251 = vperm.slane %v166, 1
    %v252 = vadd.f32 %v245, %v251
    %v253 = vadd.f32 %v249, %v251
    %v254 = vmul.f32 %v252, 0.2
    %v255 = vmul.f32 %v253, 0.2
    %v256 = vmax.f32 %v252, %v254
    %v257 = vmax.f32 %v253, %v255
    %v258 = vadd.f32 %v256, %v173
    %v259 = vadd.f32 %v257, %v174
    %v260 = vsel %vm46, %v258, -inf
    %261 = vmax.xlane.f32.xlu0 %v260
    %v262 = vpop.xlane.xlu0 %261
    %v263 = vsel %vm46, %v259, -inf
    %264 = vmax.xlane.f32.xlu0 %v263
    %v265 = vpop.xlane.xlu0 %264
    %v266 = vsub.f32 %v258, %v262
    %v267 = vsub.f32 %v259, %v265
    %v268 = vmul.f32 %v266, 1.442695
    %v269 = vpow.pop %v268
    %v270 = vmul.f32 %v267, 1.442695
    %v271 = vpow.pop %v270
    %v272 = vsel %vm46, %v269, 0.0
    %273 = vadd.xlane.f32.xlu0 %v272
    %v274 = vpop.xlane.xlu0 %273
    %v275 = vsel %vm46, %v271, 0.0
    %276 = vadd.xlane.f32.xlu0 %v275
    %v277 = vpop.xlane.xlu0 %276
    %v278 = vmax.f32 %v274, 1e-20
    %v279 = vmax.f32 %v277, 1e-20
    %v280 = vrcp.pop %v278
    %v281 = vrcp.pop %v279
    %v282 = vpack.c.bf16 %v280, %v280
    %v283 = vpack.c.bf16 %v281, %v281
    %v284 = vpack.c.bf16 %v269, %v269
    %v285 = vpack.c.bf16 %v271, %v271
    %v286 = vunpack.c.l.bf16 %v284
    %v287 = vunpack.c.l.bf16 %v285
    %v288 = vmul.f32 %v286, %v169
    %v289 = vmul.f32 %v287, %v170
    %v290 = vpack.c.bf16 %v288, %v288
    %v291 = vpack.c.bf16 %v289, %v289
    %v292 = vunpack.c.l.bf16 %v290
    %v293 = vunpack.c.l.bf16 %v291
    %v294 = vunpack.c.l.bf16 %v282
    %v295 = vunpack.c.l.bf16 %v283
    %v296 = vmul.f32 %v292, %v294
    %v297 = vmul.f32 %v293, %v295
    %v298 = vpack.c.bf16 %v297, %v296
    %v299 = vshrl.u32 %v102, 16
    %v300 = vpack.i.b16 %v299, %v299
    %v302 = vperm.slane %v300, 0
    %v303 = vunpack.c.l.bf16 %v302
    %v304 = vmul.f32 %v237, %v303
    %v305 = vmul.f32 %v238, %v303
    %v306 = vpack.c.bf16 %v305, %v304
    %v308 = vsel %vm46, %v298, 0
    %310 = vmatpush.bf16.msra.mxu0 0
    %311 = vmatpush.bf16.msra.mxu0 0
    %312 = vmatpush.bf16.msra.mxu0 0
    %313 = vmatpush.bf16.msra.mxu0 0
    %314 = vmatpush.bf16.msra.mxu0 0
    %315 = vmatpush.bf16.msra.mxu0 0
    %316 = vmatpush.bf16.msra.mxu0 0
    %317 = vmatpush.bf16.msra.mxu0 %v306
    %318 = vmatmul.bf16.gmra.mxu0 %v308
    %v319 = vpop.f32.mrf.mxu0
    %v320 = vadd.f32 0.0, %v319
    %v321 = vpop.f32.mrf.mxu0
    %v322 = vadd.f32 0.0, %v321
    %323 = vdwg.mxu0
    %v325 = vsel %vm46, %v232, 0
    %327 = vmatpush.bf16.msra.mxu0 0
    %328 = vmatpush.bf16.msra.mxu0 0
    %329 = vmatpush.bf16.msra.mxu0 0
    %330 = vmatpush.bf16.msra.mxu0 0
    %331 = vmatpush.bf16.msra.mxu0 0
    %332 = vmatpush.bf16.msra.mxu0 0
    %333 = vmatpush.bf16.msra.mxu0 0
    %334 = vmatpush.bf16.msra.mxu0 %v242
    %335 = vmatmul.bf16.gmra.mxu0 %v325
    %v336 = vpop.f32.mrf.mxu0
    %v337 = vadd.f32 %v320, %v336
    %v338 = vpop.f32.mrf.mxu0
    %v339 = vadd.f32 %v322, %v338
    %340 = vdwg.mxu0
    %v341 = vld [vmem:[%s7] sm:$0x1]
    %v343 = vperm.slane %v341, 0
    %v345 = vadd.f32 %v337, %v343
    %v346 = vadd.f32 %v339, %v343
    %v347 = vmax.f32 %v345, 0.0
    %v348 = vmax.f32 %v346, 0.0
    %v349 = vpack.c.bf16 %v347, %v347
    %v350 = vpack.c.bf16 %v348, %v348
    %vm351 = vcmask 519168
    %352 = vst.msk [vmem:[#allocation2] sm:$0xf] %vm351, %v349
    %353 = vst.msk [vmem:[#allocation2 + $0x4] sm:$0xf] %vm351, %v350
    // Predicated region
    $region34: #{tpu_custom_call.1} parent=1 // pred_check
      _
    $region35: #{tpu_custom_call.1} parent=1 // pred_check_branch
      %355 = sbr.rel (0) target = $region37
    $region36: #{tpu_custom_call.1} parent=1 // pred_region
      %357 = vsyncadd [#allocation3], 0
      %s358 = sshll.u32 [#allocation2], 4
      %s359 = int_to_ptr.vmem [resolvable:$true] %s358
      %s360 = sshll.u32 %s8, 4
      %s361 = int_to_ptr.hbm [resolvable:$true] %s360
      %366 = dma.vmem_to_hbm [thread:$0]  %s359, 128, %s361, [#allocation3], 64, 64, 4
    $region37: #{tpu_custom_call.1} parent=1 // pred_fallthru
      _
    // Predicated region
    $region38: #{tpu_custom_call.1} parent=1 // pred_check
      _
    $region39: #{tpu_custom_call.1} parent=1 // pred_check_branch
      %368 = sbr.rel (0) target = $region41
    $region40: #{tpu_custom_call.1} parent=1 // pred_region
      %370 = dma.done [#allocation3], 128
    $region41: #{tpu_custom_call.1} parent=1 // pred_fallthru
      _
    %371 = vsyncpa [#allocation3], 1

</llo_original>
